<compile_context>
chip_gen: v6e
topology: v6e:2x2x1
jax: 0.10.0
libtpu: 0.0.40
codegen_flags: <defaults>
</compile_context>

<pallas_src>
import functools

import numpy as np
import jax
import jax.numpy as jnp
from jax import lax
from jax.experimental import pallas as pl
from jax.experimental.pallas import tpu as pltpu


def _round_up(x, m):
    return ((x + m - 1) // m) * m


def _build_schedule(n_blk):
    """Balanced flattened upper-triangle (incl. diagonal) block schedule.

    Row-blocks r and n_blk-1-r are paired into one super-row of n_blk+1 entries
    (perfect balance for megacore sharding of the leading grid axis). Entries
    for one row-block are consecutive so the (1,1,1) output block stays resident.
    flag: 2 = first entry of a row-block (init accumulator), 1 = accumulate,
          0 = dummy padding entry (skip; repeats previous indices -> no new DMA).
    """
    n = n_blk
    if n == 1:
        return (np.zeros(1, np.int32), np.zeros(1, np.int32),
                np.full(1, 2, np.int32), 1, 1)
    n_super = (n + 1) // 2
    n_cols = n + 1
    bi = np.zeros((n_super, n_cols), np.int32)
    bj = np.zeros((n_super, n_cols), np.int32)
    fl = np.zeros((n_super, n_cols), np.int32)
    for r in range(n_super):
        a, b = r, n - 1 - r
        entries = [(a, j) for j in range(a, n)]
        if b != a:
            entries += [(b, j) for j in range(b, n)]
        prev = -1
        for s, (pi, pj) in enumerate(entries):
            bi[r, s], bj[r, s] = pi, pj
            fl[r, s] = 2 if pi != prev else 1
            prev = pi
        # Pad the (odd-n) middle super-row with dummies repeating the last real
        # entry: same block indices -> no extra DMA, flag 0 -> no accumulation.
        for s in range(len(entries), n_cols):
            bi[r, s], bj[r, s], fl[r, s] = entries[-1][0], entries[-1][1], 0
    return bi.reshape(-1), bj.reshape(-1), fl.reshape(-1), n_super, n_cols


def _dmc_kernel(bi_ref, bj_ref, flag_ref, xi_ref, xj_ref, rv_ref, cv_ref, out_ref,
                *, tb, b_real, n_blk, n_cols, margin1, margin2, has_pad, precision):
    r = pl.program_id(0)
    s = pl.program_id(1)
    t = r * n_cols + s
    bi = bi_ref[t]
    bj = bj_ref[t]
    flag = flag_ref[t]

    # First visited entry of this row-block: reset its partial accumulator.
    @pl.when(flag == 2)
    def _init():
        out_ref[...] = jnp.zeros_like(out_ref)

    # flag == 0 entries are schedule padding (odd block count): skip entirely.
    @pl.when(flag > 0)
    def _compute():
        # Gram block on the MXU; contract on D for both operands (no transpose).
        gram = lax.dot_general(xi_ref[...], xj_ref[...],
                               (((1,), (1,)), ((), ())),
                               preferred_element_type=jnp.float32,
                               precision=precision)

        rv = rv_ref[...]                      # (tb, 3) f32: [||x||^2, label, method]
        cv = cv_ref[...]                      # (3, tb) f32
        sq_r, lab_r, met_r = rv[:, 0:1], rv[:, 1:2], rv[:, 2:3]
        sq_c, lab_c, met_c = cv[0:1, :], cv[1:2, :], cv[2:3, :]

        d2 = sq_r + sq_c - 2.0 * gram         # (tb,1) + (1,tb) - (tb,tb)
        dist = jnp.sqrt(jnp.maximum(d2, 0.0))

        # Labels were converted to f32 exactly (class ids << 2^24), so float
        # equality here is identical to integer equality.
        same_label = lab_r == lab_c
        same_method = met_r == met_c
        margin = jnp.where(same_method, margin1, margin2)
        term = jnp.where(same_label, dist, jnp.maximum(margin - dist, 0.0))

        # Mask specialization: only diagonal blocks (strict upper triangle) and
        # blocks touching the padded tail need the iota/compare/select chain.
        needs_mask = bi == bj
        if has_pad:
            # schedule guarantees bj >= bi, so the padded tail shows up as bj==last
            needs_mask = jnp.logical_or(needs_mask, bj == n_blk - 1)

        @pl.when(needs_mask)
        def _masked():
            row_g = bi * tb + lax.broadcasted_iota(jnp.int32, (tb, tb), 0)
            col_g = bj * tb + lax.broadcasted_iota(jnp.int32, (tb, tb), 1)
            keep = (col_g > row_g) & (row_g < b_real) & (col_g < b_real)
            out_ref[...] += jnp.sum(jnp.where(keep, term, 0.0))

        @pl.when(jnp.logical_not(needs_mask))
        def _full():
            out_ref[...] += jnp.sum(term)


def dual_margin_contrastive_loss(features, labels, method_labels, *,
                                 margin1=5.0, margin2=10.0,
                                 block_b=None, use_bf16_gram=True):
    """features: (B, D) float; labels, method_labels: (B,) int. Returns scalar f32."""
    features = jnp.asarray(features)
    B, D = features.shape
    if B <= 1:
        return jnp.float32(0.0)

    feat = features.astype(jnp.float32)

    # ---- tile / padding selection (minimize padding waste; prefer 256 on tie) ----
    b8 = _round_up(B, 8)
    if block_b is None:
        if b8 <= 256:
            tb = b8
        else:
            tb = 256 if _round_up(B, 256) <= _round_up(B, 128) else 128
    else:
        block_b = int(block_b)
        tb = b8 if b8 <= block_b else _round_up(block_b, 128)
    b_pad = _round_up(B, tb)
    d_pad = _round_up(D, 128)
    n_blk = b_pad // tb
    has_pad = b_pad != B

    feat_p = jnp.pad(feat, ((0, b_pad - B), (0, d_pad - D)))
    # Labels as f32 (exact for |label| < 2^24) so one packed f32 array carries
    # squared norms + both label vectors -> single small DMA per step.
    lab_f = jnp.pad(jnp.asarray(labels).astype(jnp.float32), (0, b_pad - B))
    met_f = jnp.pad(jnp.asarray(method_labels).astype(jnp.float32), (0, b_pad - B))
    sq = jnp.sum(feat_p * feat_p, axis=-1)               # exact f32 squared norms

    row_pack = jnp.stack([sq, lab_f, met_f], axis=1)      # (b_pad, 3)
    col_pack = jnp.stack([sq, lab_f, met_f], axis=0)      # (3, b_pad)

    # bf16 Gram operands for full-rate MXU (norms/hinge/accum stay f32); the
    # f32 path forces true-f32 MXU semantics via precision=HIGHEST.
    feat_mm = feat_p.astype(jnp.bfloat16) if use_bf16_gram else feat_p
    precision = None if use_bf16_gram else lax.Precision.HIGHEST

    bi_np, bj_np, fl_np, n_super, n_cols = _build_schedule(n_blk)
    bi_arr = jnp.asarray(bi_np)
    bj_arr = jnp.asarray(bj_np)
    fl_arr = jnp.asarray(fl_np)

    kernel = functools.partial(
        _dmc_kernel, tb=tb, b_real=B, n_blk=n_blk, n_cols=n_cols,
        margin1=float(margin1), margin2=float(margin2),
        has_pad=has_pad, precision=precision)

    # index_maps get (r, s, *scalar_prefetch_refs)
    def row_feat_map(r, s, bi_r, bj_r, fl_r):
        return (bi_r[r * n_cols + s], 0)

    def col_feat_map(r, s, bi_r, bj_r, fl_r):
        return (bj_r[r * n_cols + s], 0)

    def row_vec_map(r, s, bi_r, bj_r, fl_r):
        return (bi_r[r * n_cols + s], 0)

    def col_vec_map(r, s, bi_r, bj_r, fl_r):
        return (0, bj_r[r * n_cols + s])

    def out_map(r, s, bi_r, bj_r, fl_r):
        return (bi_r[r * n_cols + s], 0, 0)

    grid_spec = pltpu.PrefetchScalarGridSpec(
        num_scalar_prefetch=3,
        grid=(n_super, n_cols),
        in_specs=[
            pl.BlockSpec((tb, d_pad), row_feat_map),   # row feature block
            pl.BlockSpec((tb, d_pad), col_feat_map),   # col feature block
            pl.BlockSpec((tb, 3), row_vec_map),        # packed row vectors
            pl.BlockSpec((3, tb), col_vec_map),        # packed col vectors
        ],
        out_specs=pl.BlockSpec((1, 1, 1), out_map),
    )

    # Right-sized VMEM: double-buffered feature blocks + (layout-padded) vector
    # packs + headroom for the (tb,tb) f32 temporaries.
    feat_bytes = 2 if use_bf16_gram else 4
    vmem_needed = (4 * tb * d_pad * feat_bytes            # xi + xj, double-buffered
                   + 2 * tb * 128 * 4                     # (tb,3) row pack (lane-padded)
                   + 2 * 8 * max(tb, 128) * 4             # (3,tb) col pack (sublane-padded)
                   + 16 * tb * tb * 4)                    # elementwise temporaries
    vmem_limit = int(min(max(vmem_needed + (8 << 20), 24 << 20), 96 << 20))

    n_visit = n_blk * (n_blk + 1) // 2
    cost = pl.CostEstimate(
        flops=int(n_visit * (2 * tb * tb * d_pad + 12 * tb * tb)),
        transcendentals=int(n_visit * tb * tb),
        bytes_accessed=int(feat_bytes * tb * d_pad * (n_visit + n_blk)
                           + 6 * 4 * b_pad + 4 * n_blk),
    )

    partials = pl.pallas_call(
        kernel,
        out_shape=jax.ShapeDtypeStruct((n_blk, 1, 1), jnp.float32),
        grid_spec=grid_spec,
        compiler_params=pltpu.CompilerParams(
            dimension_semantics=("parallel", "arbitrary"),
            vmem_limit_bytes=vmem_limit,
        ),
        cost_estimate=cost,
    )(bi_arr, bj_arr, fl_arr, feat_mm, feat_mm, row_pack, col_pack)

    return jnp.sum(partials) * (2.0 / (B * (B - 1)))


def _reference_loss(features, labels, method_labels, margin1=5.0, margin2=10.0):
    """Plain-JAX reference replicating the PyTorch double loop."""
    f = jnp.asarray(features, jnp.float32)
    d2 = jnp.sum((f[:, None, :] - f[None, :, :]) ** 2, axis=-1)
    dist = jnp.sqrt(jnp.maximum(d2, 0.0))
    B = f.shape[0]
    same_label = labels[:, None] == labels[None, :]
    same_method = method_labels[:, None] == method_labels[None, :]
    term = jnp.where(same_label, dist,
                     jnp.where(same_method,
                               jnp.maximum(margin1 - dist, 0.0),
                               jnp.maximum(margin2 - dist, 0.0)))
    upper = jnp.arange(B)[None, :] > jnp.arange(B)[:, None]
    loss = jnp.sum(jnp.where(upper, term, 0.0))
    return loss / (B * (B - 1) / 2.0) if B > 1 else jnp.float32(0.0)


if __name__ == "__main__":
    key = jax.random.PRNGKey(0)
    k_feat, k_lab, k_met = jax.random.split(key, 3)

    # Small shape consistent with the module: (B, D) features + two label vectors.
    B, D = 8, 32
    features = jax.random.normal(k_feat, (B, D), dtype=jnp.float32) * 0.5
    labels = jax.random.randint(k_lab, (B,), 0, 3, dtype=jnp.int32)
    method_labels = jax.random.randint(k_met, (B,), 0, 2, dtype=jnp.int32)
    ref = _reference_loss(features, labels, method_labels)

    # Default path: bf16 Gram operands on the MXU, f32 norms/hinge/accumulation.
    loss_bf16 = jax.block_until_ready(
        dual_margin_contrastive_loss(features, labels, method_labels))
    assert jnp.allclose(loss_bf16, ref, rtol=2e-2, atol=5e-2), (loss_bf16, ref)

    # Exact-f32 Gram path (precision=HIGHEST) — tighter tolerance.
    loss_f32 = jax.block_until_ready(
        dual_margin_contrastive_loss(features, labels, method_labels,
                                     use_bf16_gram=False))
    assert jnp.allclose(loss_f32, ref, rtol=1e-3, atol=1e-3), (loss_f32, ref)

    # Multi-block path: odd block count (paired + dummy-padded super-rows),
    # diagonal masking, padded last block, flattened triangular schedule.
    B2, D2 = 300, 48
    f2 = jax.random.normal(jax.random.PRNGKey(1), (B2, D2), dtype=jnp.float32) * 0.5
    l2 = jax.random.randint(jax.random.PRNGKey(2), (B2,), 0, 4, dtype=jnp.int32)
    m2 = jax.random.randint(jax.random.PRNGKey(3), (B2,), 0, 2, dtype=jnp.int32)
    ref2 = _reference_loss(f2, l2, m2)
    loss2 = jax.block_until_ready(
        dual_margin_contrastive_loss(f2, l2, m2, block_b=128))
    assert jnp.allclose(loss2, ref2, rtol=2e-2, atol=5e-2), (loss2, ref2)

    print("KERNEL_OK")
</pallas_src>

<mosaic_0001>
module attributes {stable_mosaic.version = 11 : i64} {
  func.func @_dmc_kernel(%arg0: i32, %arg1: i32, %arg2: memref<1xi32, #tpu.memory_space<smem>>, %arg3: memref<1xi32, #tpu.memory_space<smem>>, %arg4: memref<1xi32, #tpu.memory_space<smem>>, %arg5: memref<8x128xbf16, #tpu.memory_space<vmem>>, %arg6: memref<8x128xbf16, #tpu.memory_space<vmem>>, %arg7: memref<8x3xf32, #tpu.memory_space<vmem>>, %arg8: memref<3x8xf32, #tpu.memory_space<vmem>>, %arg9: memref<1x1x1xf32, #tpu.memory_space<vmem>>) attributes {dimension_semantics = [#tpu.dimension_semantics<parallel>, #tpu.dimension_semantics<arbitrary>], iteration_bounds = array<i64: 1, 1>, scalar_prefetch = 3 : i64, scratch_operands = 0 : i64, tpu.core_type = #tpu.core_type<tc>, window_params = [{transform_indices = @transform_0, window_bounds = array<i64: 8, 128>}, {transform_indices = @transform_1, window_bounds = array<i64: 8, 128>}, {transform_indices = @transform_2, window_bounds = array<i64: 8, 3>}, {transform_indices = @transform_3, window_bounds = array<i64: 3, 8>}, {transform_indices = @transform_4, window_bounds = array<i64: 1, 1, 1>}]} {
    %c1_i32 = arith.constant 1 : i32
    %0 = arith.muli %arg0, %c1_i32 : i32
    %1 = arith.addi %0, %arg1 : i32
    %2 = arith.index_cast %1 : i32 to index
    %3 = memref.load %arg2[%2] : memref<1xi32, #tpu.memory_space<smem>>
    %4 = arith.index_cast %1 : i32 to index
    %5 = memref.load %arg3[%4] : memref<1xi32, #tpu.memory_space<smem>>
    %6 = arith.index_cast %1 : i32 to index
    %7 = memref.load %arg4[%6] : memref<1xi32, #tpu.memory_space<smem>>
    %c2_i32 = arith.constant 2 : i32
    %8 = arith.cmpi eq, %7, %c2_i32 : i32
    %9 = arith.extui %8 : i1 to i32
    %c0_i32 = arith.constant 0 : i32
    %10 = arith.cmpi ne, %9, %c0_i32 : i32
    scf.if %10 {
      %cst = arith.constant 0.000000e+00 : f32
      %14 = vector.broadcast %cst : f32 to vector<1x1x1xf32>
      %c0 = arith.constant 0 : index
      %c0_2 = arith.constant 0 : index
      %c0_3 = arith.constant 0 : index
      %15 = vector.load %arg9[%c0, %c0_2, %c0_3] : memref<1x1x1xf32, #tpu.memory_space<vmem>>, vector<1x1x1xf32>
      tpu.vector_store %arg9[%c0, %c0_2, %c0_3], %14 {strides = array<i32>} : memref<1x1x1xf32, #tpu.memory_space<vmem>>, vector<1x1x1xf32>,
    } else {
    }
    %c0_i32_0 = arith.constant 0 : i32
    %11 = arith.cmpi sgt, %7, %c0_i32_0 : i32
    %12 = arith.extui %11 : i1 to i32
    %c0_i32_1 = arith.constant 0 : i32
    %13 = arith.cmpi ne, %12, %c0_i32_1 : i32
    scf.if %13 {
      %c0 = arith.constant 0 : index
      %c0_2 = arith.constant 0 : index
      %14 = vector.load %arg5[%c0, %c0_2] : memref<8x128xbf16, #tpu.memory_space<vmem>>, vector<8x128xbf16>
      %c0_3 = arith.constant 0 : index
      %c0_4 = arith.constant 0 : index
      %15 = vector.load %arg6[%c0_3, %c0_4] : memref<8x128xbf16, #tpu.memory_space<vmem>>, vector<8x128xbf16>
      %cst = arith.constant dense<0.000000e+00> : vector<8x8xf32>
      %16 = tpu.matmul %14, %15, %cst {dimension_numbers = #tpu.dot_dimension_numbers<[1], [1], [0], [0], [0, 0, 1, 0], [], []>} : vector<8x128xbf16>, vector<8x128xbf16>, vector<8x8xf32> -> vector<8x8xf32>
      %c0_5 = arith.constant 0 : index
      %c0_6 = arith.constant 0 : index
      %17 = vector.load %arg7[%c0_5, %c0_6] : memref<8x3xf32, #tpu.memory_space<vmem>>, vector<8x3xf32>
      %c0_7 = arith.constant 0 : index
      %c0_8 = arith.constant 0 : index
      %18 = vector.load %arg8[%c0_7, %c0_8] : memref<3x8xf32, #tpu.memory_space<vmem>>, vector<3x8xf32>
      %19 = vector.extract_strided_slice %17 {offsets = [0, 0], sizes = [8, 1], strides = [1, 1]} : vector<8x3xf32> to vector<8x1xf32>
      %20 = vector.extract_strided_slice %17 {offsets = [0, 1], sizes = [8, 1], strides = [1, 1]} : vector<8x3xf32> to vector<8x1xf32>
      %21 = vector.extract_strided_slice %17 {offsets = [0, 2], sizes = [8, 1], strides = [1, 1]} : vector<8x3xf32> to vector<8x1xf32>
      %22 = vector.extract_strided_slice %18 {offsets = [0, 0], sizes = [1, 8], strides = [1, 1]} : vector<3x8xf32> to vector<1x8xf32>
      %23 = vector.extract_strided_slice %18 {offsets = [1, 0], sizes = [1, 8], strides = [1, 1]} : vector<3x8xf32> to vector<1x8xf32>
      %24 = vector.extract_strided_slice %18 {offsets = [2, 0], sizes = [1, 8], strides = [1, 1]} : vector<3x8xf32> to vector<1x8xf32>
      %25 = vector.broadcast %19 : vector<8x1xf32> to vector<8x8xf32>
      %26 = vector.broadcast %22 : vector<1x8xf32> to vector<8x8xf32>
      %27 = arith.addf %25, %26 : vector<8x8xf32>
      %cst_9 = arith.constant 2.000000e+00 : f32
      %28 = vector.broadcast %cst_9 : f32 to vector<8x8xf32>
      %29 = arith.mulf %28, %16 : vector<8x8xf32>
      %30 = arith.subf %27, %29 : vector<8x8xf32>
      %cst_10 = arith.constant 0.000000e+00 : f32
      %31 = vector.broadcast %cst_10 : f32 to vector<8x8xf32>
      %32 = arith.maximumf %30, %31 : vector<8x8xf32>
      %33 = math.sqrt %32 : vector<8x8xf32>
      %34 = vector.broadcast %20 : vector<8x1xf32> to vector<8x8xf32>
      %35 = vector.broadcast %23 : vector<1x8xf32> to vector<8x8xf32>
      %36 = arith.cmpf oeq, %34, %35 : vector<8x8xf32>
      %37 = vector.broadcast %21 : vector<8x1xf32> to vector<8x8xf32>
      %38 = vector.broadcast %24 : vector<1x8xf32> to vector<8x8xf32>
      %39 = arith.cmpf oeq, %37, %38 : vector<8x8xf32>
      %cst_11 = arith.constant 5.000000e+00 : f32
      %cst_12 = arith.constant 1.000000e+01 : f32
      %40 = vector.broadcast %cst_11 : f32 to vector<8x8xf32>
      %41 = vector.broadcast %cst_12 : f32 to vector<8x8xf32>
      %42 = arith.select %39, %40, %41 : vector<8x8xi1>, vector<8x8xf32>
      %43 = arith.subf %42, %33 : vector<8x8xf32>
      %cst_13 = arith.constant 0.000000e+00 : f32
      %44 = vector.broadcast %cst_13 : f32 to vector<8x8xf32>
      %45 = arith.maximumf %43, %44 : vector<8x8xf32>
      %46 = arith.select %36, %33, %45 : vector<8x8xi1>, vector<8x8xf32>
      %47 = arith.cmpi eq, %3, %5 : i32
      %48 = arith.extui %47 : i1 to i32
      %c0_i32_14 = arith.constant 0 : i32
      %49 = arith.cmpi ne, %48, %c0_i32_14 : i32
      scf.if %49 {
        %c8_i32 = arith.constant 8 : i32
        %53 = arith.muli %3, %c8_i32 : i32
        %54 = tpu.iota {dimensions = array<i32: 0>} : vector<8x8xi32>
        %55 = vector.broadcast %53 : i32 to vector<8x8xi32>
        %56 = arith.addi %55, %54 : vector<8x8xi32>
        %c8_i32_16 = arith.constant 8 : i32
        %57 = arith.muli %5, %c8_i32_16 : i32
        %58 = tpu.iota {dimensions = array<i32: 1>} : vector<8x8xi32>
        %59 = vector.broadcast %57 : i32 to vector<8x8xi32>
        %60 = arith.addi %59, %58 : vector<8x8xi32>
        %61 = arith.cmpi sgt, %60, %56 : vector<8x8xi32>
        %c8_i32_17 = arith.constant 8 : i32
        %62 = vector.broadcast %c8_i32_17 : i32 to vector<8x8xi32>
        %63 = arith.cmpi slt, %56, %62 : vector<8x8xi32>
        %64 = arith.andi %61, %63 : vector<8x8xi1>
        %c8_i32_18 = arith.constant 8 : i32
        %65 = vector.broadcast %c8_i32_18 : i32 to vector<8x8xi32>
        %66 = arith.cmpi slt, %60, %65 : vector<8x8xi32>
        %67 = arith.andi %64, %66 : vector<8x8xi1>
        %c0_19 = arith.constant 0 : index
        %c0_20 = arith.constant 0 : index
        %c0_21 = arith.constant 0 : index
        %68 = vector.load %arg9[%c0_19, %c0_20, %c0_21] : memref<1x1x1xf32, #tpu.memory_space<vmem>>, vector<1x1x1xf32>
        %cst_22 = arith.constant 0.000000e+00 : f32
        %69 = vector.broadcast %cst_22 : f32 to vector<8x8xf32>
        %70 = arith.select %67, %46, %69 : vector<8x8xi1>, vector<8x8xf32>
        %71 = vector.shape_cast %70 : vector<8x8xf32> to vector<1x8x8xf32>
        %cst_23 = arith.constant dense<0.000000e+00> : vector<1xf32>
        %72 = vector.multi_reduction <add>, %71, %cst_23 [1, 2] : vector<1x8x8xf32> to vector<1xf32>
        %73 = vector.shape_cast %72 : vector<1xf32> to vector<1x1x1xf32>
        %74 = vector.extract %73[0, 0, 0] : f32 from vector<1x1x1xf32>
        %75 = vector.broadcast %74 : f32 to vector<1x1x1xf32>
        %76 = arith.addf %68, %75 : vector<1x1x1xf32>
        %c0_24 = arith.constant 0 : index
        %c0_25 = arith.constant 0 : index
        %c0_26 = arith.constant 0 : index
        %77 = vector.load %arg9[%c0_24, %c0_25, %c0_26] : memref<1x1x1xf32, #tpu.memory_space<vmem>>, vector<1x1x1xf32>
        tpu.vector_store %arg9[%c0_24, %c0_25, %c0_26], %76 {strides = array<i32>} : memref<1x1x1xf32, #tpu.memory_space<vmem>>, vector<1x1x1xf32>,
      } else {
      }
      %true = arith.constant true
      %50 = arith.xori %47, %true : i1
      %51 = arith.extui %50 : i1 to i32
      %c0_i32_15 = arith.constant 0 : i32
      %52 = arith.cmpi ne, %51, %c0_i32_15 : i32
      scf.if %52 {
        %c0_16 = arith.constant 0 : index
        %c0_17 = arith.constant 0 : index
        %c0_18 = arith.constant 0 : index
        %53 = vector.load %arg9[%c0_16, %c0_17, %c0_18] : memref<1x1x1xf32, #tpu.memory_space<vmem>>, vector<1x1x1xf32>
        %54 = vector.shape_cast %46 : vector<8x8xf32> to vector<1x8x8xf32>
        %cst_19 = arith.constant dense<0.000000e+00> : vector<1xf32>
        %55 = vector.multi_reduction <add>, %54, %cst_19 [1, 2] : vector<1x8x8xf32> to vector<1xf32>
        %56 = vector.shape_cast %55 : vector<1xf32> to vector<1x1x1xf32>
        %57 = vector.extract %56[0, 0, 0] : f32 from vector<1x1x1xf32>
        %58 = vector.broadcast %57 : f32 to vector<1x1x1xf32>
        %59 = arith.addf %53, %58 : vector<1x1x1xf32>
        %c0_20 = arith.constant 0 : index
        %c0_21 = arith.constant 0 : index
        %c0_22 = arith.constant 0 : index
        %60 = vector.load %arg9[%c0_20, %c0_21, %c0_22] : memref<1x1x1xf32, #tpu.memory_space<vmem>>, vector<1x1x1xf32>
        tpu.vector_store %arg9[%c0_20, %c0_21, %c0_22], %59 {strides = array<i32>} : memref<1x1x1xf32, #tpu.memory_space<vmem>>, vector<1x1x1xf32>,
      } else {
      }
    } else {
    }
    return
  }
  func.func @transform_0(%arg0: i32, %arg1: i32, %arg2: memref<1xi32, #tpu.memory_space<smem>>, %arg3: memref<1xi32, #tpu.memory_space<smem>>, %arg4: memref<1xi32, #tpu.memory_space<smem>>) -> (i32, i32) {
    %c1_i32 = arith.constant 1 : i32
    %0 = arith.muli %arg0, %c1_i32 : i32
    %1 = arith.addi %0, %arg1 : i32
    %2 = arith.index_cast %1 : i32 to index
    %3 = memref.load %arg2[%2] : memref<1xi32, #tpu.memory_space<smem>>
    %c0_i32 = arith.constant 0 : i32
    %c0_i32_0 = arith.constant 0 : i32
    return %3, %c0_i32 : i32, i32
  }
  func.func @transform_1(%arg0: i32, %arg1: i32, %arg2: memref<1xi32, #tpu.memory_space<smem>>, %arg3: memref<1xi32, #tpu.memory_space<smem>>, %arg4: memref<1xi32, #tpu.memory_space<smem>>) -> (i32, i32) {
    %c1_i32 = arith.constant 1 : i32
    %0 = arith.muli %arg0, %c1_i32 : i32
    %1 = arith.addi %0, %arg1 : i32
    %2 = arith.index_cast %1 : i32 to index
    %3 = memref.load %arg3[%2] : memref<1xi32, #tpu.memory_space<smem>>
    %c0_i32 = arith.constant 0 : i32
    %c0_i32_0 = arith.constant 0 : i32
    return %3, %c0_i32 : i32, i32
  }
  func.func @transform_2(%arg0: i32, %arg1: i32, %arg2: memref<1xi32, #tpu.memory_space<smem>>, %arg3: memref<1xi32, #tpu.memory_space<smem>>, %arg4: memref<1xi32, #tpu.memory_space<smem>>) -> (i32, i32) {
    %c1_i32 = arith.constant 1 : i32
    %0 = arith.muli %arg0, %c1_i32 : i32
    %1 = arith.addi %0, %arg1 : i32
    %2 = arith.index_cast %1 : i32 to index
    %3 = memref.load %arg2[%2] : memref<1xi32, #tpu.memory_space<smem>>
    %c0_i32 = arith.constant 0 : i32
    %c0_i32_0 = arith.constant 0 : i32
    return %3, %c0_i32 : i32, i32
  }
  func.func @transform_3(%arg0: i32, %arg1: i32, %arg2: memref<1xi32, #tpu.memory_space<smem>>, %arg3: memref<1xi32, #tpu.memory_space<smem>>, %arg4: memref<1xi32, #tpu.memory_space<smem>>) -> (i32, i32) {
    %c1_i32 = arith.constant 1 : i32
    %0 = arith.muli %arg0, %c1_i32 : i32
    %1 = arith.addi %0, %arg1 : i32
    %2 = arith.index_cast %1 : i32 to index
    %3 = memref.load %arg3[%2] : memref<1xi32, #tpu.memory_space<smem>>
    %c0_i32 = arith.constant 0 : i32
    %c0_i32_0 = arith.constant 0 : i32
    return %c0_i32, %3 : i32, i32
  }
  func.func @transform_4(%arg0: i32, %arg1: i32, %arg2: memref<1xi32, #tpu.memory_space<smem>>, %arg3: memref<1xi32, #tpu.memory_space<smem>>, %arg4: memref<1xi32, #tpu.memory_space<smem>>) -> (i32, i32, i32) {
    %c1_i32 = arith.constant 1 : i32
    %0 = arith.muli %arg0, %c1_i32 : i32
    %1 = arith.addi %0, %arg1 : i32
    %2 = arith.index_cast %1 : i32 to index
    %3 = memref.load %arg2[%2] : memref<1xi32, #tpu.memory_space<smem>>
    %c0_i32 = arith.constant 0 : i32
    %c0_i32_0 = arith.constant 0 : i32
    %c0_i32_1 = arith.constant 0 : i32
    return %3, %c0_i32, %c0_i32_0 : i32, i32, i32
  }
}

</mosaic_0001>

<llo_original>
// kernel: tpu_custom_call.1
$region0: #{tpu_custom_call.1}
  #allocation0 [shape = 'u32[]', space=smem, size = 0x4, offset = 0x4, fixed_abs, tag = 'smem constant byte address 0x4 - core index']
  #allocation1 [shape = 'u32[144,128]{1,0:T(1,128)}', space=vmem, size = 0x12000, scoped, tag = 'internal scratch']
  #allocation2 [shape = 's32[1]{0}', space=sflag, size = 0x4, scoped, tag = 'scoped memory for tpu_custom_call.1']
  #allocation3 [shape = 's32[1]{0:T(128)S(6)}', space=smem, size = 0x200, scoped, tag = 'prefetched SMEM operand 0']
  #allocation4 [shape = 's32[1]{0:T(128)S(6)}', space=smem, size = 0x200, scoped, tag = 'prefetched SMEM operand 1']
  #allocation5 [shape = 's32[1]{0:T(128)S(6)}', space=smem, size = 0x200, scoped, tag = 'prefetched SMEM operand 2']
  %s0 = inlined_call_operand.<no memory space> [shape: s32[1], index: 0, kind: input, shape index: {}]
  %s1 = inlined_call_operand.<no memory space> [shape: s32[1], index: 1, kind: input, shape index: {}]
  %s2 = inlined_call_operand.<no memory space> [shape: s32[1], index: 2, kind: input, shape index: {}]
  %s3 = inlined_call_operand.vmem [shape: bf16[8,128], index: 3, kind: input, shape index: {}]
  %s4 = inlined_call_operand.vmem [shape: bf16[8,128], index: 4, kind: input, shape index: {}]
  %s5 = inlined_call_operand.vmem [shape: f32[8,3], index: 5, kind: input, shape index: {}]
  %s6 = inlined_call_operand.vmem [shape: f32[3,8], index: 6, kind: input, shape index: {}]
  %s7 = inlined_call_operand.hbm [shape: f32[1,1,1], index: 7, kind: output, shape index: {}]
  %s8 = sld [smem:[#allocation0]]
  $region42: #{tpu_custom_call.1} parent=0
    _
  %s10 = ssub.s32 1, %s8
  %s11 = scalar_select 0, %s10, %s8
  %12 = sst [smem:[#allocation3]] %s0
  %13 = sst [smem:[#allocation4]] %s1
  %14 = sst [smem:[#allocation5]] %s2
  $region1: #{tpu_custom_call.1} parent=0
    #allocation6 [shape = 'u8[512]{0}', space=vmem, size = 0x400, scoped, tag = 'output window, operand 0, single buffered']
    #allocation7 [shape = 's32[1]{0}', space=sflag, size = 0x4, scoped, tag = 'scoped memory for tpu_custom_call.1']
    %15 = vsyncpa [#allocation7], 0
    // Predicated region
    $region2: #{tpu_custom_call.1} parent=1 // pred_check
      _
    $region3: #{tpu_custom_call.1} parent=1 // pred_check_branch
      %17 = sbr.rel (0) target = $region5
    $region4: #{tpu_custom_call.1} parent=1 // pred_region
      %s18 = sadd.s32 0, 0
      %s19 = sld [smem:[#allocation3 + %s18]]
      %p20 = scmp.lt.s32.totalorder %s19, 0
      %s21 = scalar_select %p20, %s19, 0
      %s22 = smul.addr %s21, 4
      %s23 = scalar_lea.vmem %s3, %s22
      %s24 = sadd.s32 0, 0
      %s25 = sld [smem:[#allocation3 + %s24]]
    $region5: #{tpu_custom_call.1} parent=1 // pred_fallthru
      _
    // Predicated region
    $region6: #{tpu_custom_call.1} parent=1 // pred_check
      _
    $region7: #{tpu_custom_call.1} parent=1 // pred_check_branch
      %27 = sbr.rel (0) target = $region9
    $region8: #{tpu_custom_call.1} parent=1 // pred_region
      %s28 = sadd.s32 0, 0
      %s29 = sld [smem:[#allocation4 + %s28]]
      %p30 = scmp.lt.s32.totalorder %s29, 0
      %s31 = scalar_select %p30, %s29, 0
      %s32 = smul.addr %s31, 4
      %s33 = scalar_lea.vmem %s4, %s32
      %s34 = sadd.s32 0, 0
      %s35 = sld [smem:[#allocation4 + %s34]]
    $region9: #{tpu_custom_call.1} parent=1 // pred_fallthru
      _
    // Predicated region
    $region10: #{tpu_custom_call.1} parent=1 // pred_check
      _
    $region11: #{tpu_custom_call.1} parent=1 // pred_check_branch
      %37 = sbr.rel (0) target = $region13
    $region12: #{tpu_custom_call.1} parent=1 // pred_region
      %s38 = sadd.s32 0, 0
      %s39 = sld [smem:[#allocation3 + %s38]]
      %p40 = scmp.lt.s32.totalorder %s39, 0
      %s41 = scalar_select %p40, %s39, 0
      %s42 = smul.addr %s41, 8
      %s43 = scalar_lea.vmem %s5, %s42
      %s44 = sadd.s32 0, 0
      %s45 = sld [smem:[#allocation3 + %s44]]
    $region13: #{tpu_custom_call.1} parent=1 // pred_fallthru
      _
    // Predicated region
    $region14: #{tpu_custom_call.1} parent=1 // pred_check
      _
    $region15: #{tpu_custom_call.1} parent=1 // pred_check_branch
      %47 = sbr.rel (0) target = $region17
    $region16: #{tpu_custom_call.1} parent=1 // pred_region
      %s48 = sadd.s32 0, 0
      %s49 = sld [smem:[#allocation4 + %s48]]
      %p50 = scmp.lt.s32.totalorder %s49, 0
      %s51 = scalar_select %p50, %s49, 0
      %s52 = smul.addr %s51, 4
      %s53 = scalar_lea.vmem %s6, %s52
      %s54 = sadd.s32 0, 0
      %s55 = sld [smem:[#allocation4 + %s54]]
    $region17: #{tpu_custom_call.1} parent=1 // pred_fallthru
      _
    %s56 = sadd.s32 0, 0
    %s57 = sld [smem:[#allocation3 + %s56]]
    %p58 = scmp.lt.s32.totalorder %s57, 0
    %s59 = scalar_select %p58, %s57, 0
    %s60 = smul.addr %s59, 4
    %s61 = scalar_lea.vmem %s3, %s60
    %s62 = sadd.s32 0, 0
    %s63 = sld [smem:[#allocation4 + %s62]]
    %p64 = scmp.lt.s32.totalorder %s63, 0
    %s65 = scalar_select %p64, %s63, 0
    %s66 = smul.addr %s65, 4
    %s67 = scalar_lea.vmem %s4, %s66
    %s68 = sadd.s32 0, 0
    %s69 = sld [smem:[#allocation3 + %s68]]
    %p70 = scmp.lt.s32.totalorder %s69, 0
    %s71 = scalar_select %p70, %s69, 0
    %s72 = smul.addr %s71, 8
    %s73 = scalar_lea.vmem %s5, %s72
    %s74 = sadd.s32 0, 0
    %s75 = sld [smem:[#allocation4 + %s74]]
    %p76 = scmp.lt.s32.totalorder %s75, 0
    %s77 = scalar_select %p76, %s75, 0
    %s78 = smul.addr %s77, 4
    %s79 = scalar_lea.vmem %s6, %s78
    %s80 = sadd.s32 0, 0
    %s81 = sld [smem:[#allocation3 + %s80]]
    %p82 = scmp.lt.s32.totalorder %s81, 0
    %s83 = scalar_select %p82, %s81, 0
    %s84 = smul.addr %s83, 4
    %s85 = scalar_lea.vmem %s3, %s84
    %s86 = sadd.s32 0, 0
    %s87 = sld [smem:[#allocation3 + %s86]]
    %s88 = sadd.s32 0, 0
    %s89 = sld [smem:[#allocation4 + %s88]]
    %p90 = scmp.lt.s32.totalorder %s89, 0
    %s91 = scalar_select %p90, %s89, 0
    %s92 = smul.addr %s91, 4
    %s93 = scalar_lea.vmem %s4, %s92
    %s94 = sadd.s32 0, 0
    %s95 = sld [smem:[#allocation4 + %s94]]
    %s96 = sadd.s32 0, 0
    %s97 = sld [smem:[#allocation3 + %s96]]
    %p98 = scmp.lt.s32.totalorder %s97, 0
    %s99 = scalar_select %p98, %s97, 0
    %s100 = smul.addr %s99, 8
    %s101 = scalar_lea.vmem %s5, %s100
    %s102 = sadd.s32 0, 0
    %s103 = sld [smem:[#allocation3 + %s102]]
    %s104 = sadd.s32 0, 0
    %s105 = sld [smem:[#allocation4 + %s104]]
    %p106 = scmp.lt.s32.totalorder %s105, 0
    %s107 = scalar_select %p106, %s105, 0
    %s108 = smul.addr %s107, 4
    %s109 = scalar_lea.vmem %s6, %s108
    %s110 = sadd.s32 0, 0
    %s111 = sld [smem:[#allocation4 + %s110]]
    %s112 = sadd.s32 0, 0
    %s113 = sld [smem:[#allocation3 + %s112]]
    %s115 = sadd.s32 0, 0
    %s116 = sld [smem:[#allocation3 + %s115]]
    %s117 = sld [smem:[#allocation4 + %s115]]
    %s118 = sld [smem:[#allocation5 + %s115]]
    %p119 = scmp.eq.s32.totalorder %s118, 2
    // Predicated region
    $region18: #{tpu_custom_call.1} parent=1 // pred_check
      %p120 = pneg %p119
    $region19: #{tpu_custom_call.1} parent=1 // pred_check_branch
      %122 = sbr.rel (%p120) target = $region21
    $region20: #{tpu_custom_call.1} parent=1 // pred_region
      %vm123 = vcmask 0
      %124 = vst.msk [vmem:[#allocation6] sm:$0x1] %vm123, 0.0
    $region21: #{tpu_custom_call.1} parent=1 // pred_fallthru
      _
    %p125 = scmp.gt.s32.totalorder %s118, 0
    // Predicated region
    $region22: #{tpu_custom_call.1} parent=1 // pred_check
      %p126 = pneg %p125
    $region23: #{tpu_custom_call.1} parent=1 // pred_check_branch
      %128 = sbr.rel (%p126) target = $region25
    $region24: #{tpu_custom_call.1} parent=1 // pred_region
      %v129 = vld [vmem:[%s85] sm:$0xf]
      %v130 = vld [vmem:[%s93] sm:$0xf]
      %131 = vmatprep.subr.bf16.mxu0 0
      %132 = vmatpush1.bf16.xpose.msra.mxu0 0
      %133 = vmatprep.subr.bf16.mxu0 0
      %134 = vmatpush1.bf16.xpose.msra.mxu0 0
      %135 = vmatprep.subr.bf16.mxu0 0
      %136 = vmatpush1.bf16.xpose.msra.mxu0 0
      %137 = vmatprep.subr.bf16.mxu0 0
      %138 = vmatpush1.bf16.xpose.msra.mxu0 0
      %139 = vmatprep.subr.bf16.mxu0 0
      %140 = vmatpush1.bf16.xpose.msra.mxu0 0
      %141 = vmatprep.subr.bf16.mxu0 0
      %142 = vmatpush1.bf16.xpose.msra.mxu0 0
      %143 = vmatprep.subr.bf16.mxu0 0
      %144 = vmatpush1.bf16.xpose.msra.mxu0 0
      %145 = vmatprep.subr.bf16.mxu0 0
      %146 = vmatpush1.bf16.xpose.msra.mxu0 %v130
      %147 = vmatprep.subr.bf16.mxu0 0
      %148 = vmatpush2.bf16.xpose.msra.mxu0 0
      %149 = vmatprep.subr.bf16.mxu0 0
      %150 = vmatpush2.bf16.xpose.msra.mxu0 0
      %151 = vmatprep.subr.bf16.mxu0 0
      %152 = vmatpush2.bf16.xpose.msra.mxu0 0
      %153 = vmatprep.subr.bf16.mxu0 0
      %154 = vmatpush2.bf16.xpose.msra.mxu0 0
      %155 = vmatprep.subr.bf16.mxu0 0
      %156 = vmatpush2.bf16.xpose.msra.mxu0 0
      %157 = vmatprep.subr.bf16.mxu0 0
      %158 = vmatpush2.bf16.xpose.msra.mxu0 0
      %159 = vmatprep.subr.bf16.mxu0 0
      %160 = vmatpush2.bf16.xpose.msra.mxu0 0
      %161 = vmatprep.subr.bf16.mxu0 0
      %162 = vmatpush2.bf16.xpose.msra.mxu0 0
      %163 = vmatprep.mubr.bf16.mxu0 0
      %164 = vmatmul.mubr.bf16.gmra.mxu0 %v129
      %v165 = vpop.f32.mrf.mxu0
      %v166 = vadd.f32 0.0, %v165
      %v167 = vpop.f32.mrf.mxu0
      %v168 = vpop.f32.mrf.mxu0
      %v169 = vpop.f32.mrf.mxu0
      %170 = vdwg.mxu0
      %v171 = vld [vmem:[%s101] sm:$0xff]
      %v172 = vld [vmem:[%s109] sm:$0x7]
      %174 = vset.pattern.permute.xlu0 0
      %175 = vperm.xlu0 %174, %v171
      %v176 = vpop.permute.xlu0 %175
      %v178 = vlaneseq
      %v179 = vshrl.u32 %v178, 7
      %v180 = vsub.s32 0, %v179
      %v181 = vrot.slane %v172, %v180
      %v182 = vadd.f32 %v176, %v181
      %v183 = vmul.f32 %v166, 2.0
      %v184 = vsub.f32 %v182, %v183
      %v185 = vmax.f32 %v184, 0.0
      %v186 = vrsqrt.pop %v185
      %v187 = vmul.f32 %v185, %v186
      %vm188 = vcmp.eq.f32.partialorder %v185, inf
      %v189 = vsel %vm188, %v185, %v187
      %vm190 = vcmp.eq.f32.partialorder %v185, 0.0
      %v191 = vand.u32 %v185, 2147483648
      %v192 = vsel %vm190, %v191, %v189
      %193 = vset.pattern.permute.xlu0 1
      %194 = vperm.xlu0 %193, %v171
      %v195 = vpop.permute.xlu0 %194
      %v197 = vlaneseq
      %v198 = vshrl.u32 %v197, 7
      %v199 = vsub.s32 1, %v198
      %v200 = vrot.slane %v172, %v199
      %vm201 = vcmp.eq.f32.partialorder %v195, %v200
      %202 = vset.pattern.permute.xlu0 2
      %203 = vperm.xlu0 %202, %v171
      %v204 = vpop.permute.xlu0 %203
      %v206 = vlaneseq
      %v207 = vshrl.u32 %v206, 7
      %v208 = vsub.s32 2, %v207
      %v209 = vrot.slane %v172, %v208
      %vm210 = vcmp.eq.f32.partialorder %v204, %v209
      %v211 = vsel %vm210, 5.0, 10.0
      %v212 = vsub.f32 %v211, %v192
      %v213 = vmax.f32 %v212, 0.0
      %v214 = vsel %vm201, %v192, %v213
      %p215 = scmp.eq.s32.totalorder %s116, %s117
      // Predicated region
      $region26: #{tpu_custom_call.1} parent=24 // pred_check
        %p216 = pneg %p215
      $region27: #{tpu_custom_call.1} parent=24 // pred_check_branch
        %218 = sbr.rel (%p216) target = $region29
      $region28: #{tpu_custom_call.1} parent=24 // pred_region
        %s219 = smul.u32 %s116, 8
        %v220 = vlaneseq
        %v221 = vshrl.u32 %v220, 7
        %v222 = vstv %s219
        %v223 = vadd.s32 %v222, %v221
        %s224 = smul.u32 %s117, 8
        %v225 = vlaneseq
        %v226 = vand.u32 %v225, 127
        %v227 = vstv %s224
        %v228 = vadd.s32 %v227, %v226
        %vm229 = vcmp.gt.s32.totalorder %v228, %v223
        %vm230 = vcmp.lt.s32.totalorder %v223, 8
        %vm231 = vmand %vm229, %vm230
        %vm232 = vcmp.lt.s32.totalorder %v228, 8
        %vm233 = vmand %vm231, %vm232
        %v234 = vld [vmem:[#allocation6] sm:$0x1]
        %v235 = vsel %vm233, %v214, 0.0
        %vm236 = vcmask 64512
        %v237 = vsel %vm236, %v235, 0.0
        %238 = vadd.xlane.f32.xlu0 %v237
        %v239 = vpop.xlane.xlu0 %238
        %v240 = vrot.slane %v239, 4
        %v241 = vadd.f32 %v239, %v240
        %v242 = vrot.slane %v241, 2
        %v243 = vadd.f32 %v241, %v242
        %v244 = vrot.slane %v243, 1
        %v245 = vadd.f32 %v243, %v244
        %s246 = vtos %v245
        %v247 = vstv %s246
        %v248 = vadd.f32 %v234, %v247
        %vm249 = vcmask 0
        %250 = vst.msk [vmem:[#allocation6] sm:$0x1] %vm249, %v248
      $region29: #{tpu_custom_call.1} parent=24 // pred_fallthru
        _
      %p251 = scmp.ne.s32.totalorder %s116, %s117
      // Predicated region
      $region30: #{tpu_custom_call.1} parent=24 // pred_check
        %p252 = pneg %p251
      $region31: #{tpu_custom_call.1} parent=24 // pred_check_branch
        %254 = sbr.rel (%p252) target = $region33
      $region32: #{tpu_custom_call.1} parent=24 // pred_region
        %v255 = vld [vmem:[#allocation6] sm:$0x1]
        %vm256 = vcmask 64512
        %v257 = vsel %vm256, %v214, 0.0
        %258 = vadd.xlane.f32.xlu0 %v257
        %v259 = vpop.xlane.xlu0 %258
        %v260 = vrot.slane %v259, 4
        %v261 = vadd.f32 %v259, %v260
        %v262 = vrot.slane %v261, 2
        %v263 = vadd.f32 %v261, %v262
        %v264 = vrot.slane %v263, 1
        %v265 = vadd.f32 %v263, %v264
        %s266 = vtos %v265
        %v267 = vstv %s266
        %v268 = vadd.f32 %v255, %v267
        %vm269 = vcmask 0
        %270 = vst.msk [vmem:[#allocation6] sm:$0x1] %vm269, %v268
      $region33: #{tpu_custom_call.1} parent=24 // pred_fallthru
        _
    $region25: #{tpu_custom_call.1} parent=1 // pred_fallthru
      _
    // Predicated region
    $region34: #{tpu_custom_call.1} parent=1 // pred_check
      _
    $region35: #{tpu_custom_call.1} parent=1 // pred_check_branch
      %272 = sbr.rel (0) target = $region37
    $region36: #{tpu_custom_call.1} parent=1 // pred_region
      %s273 = sadd.s32 0, 0
      %s274 = sld [smem:[#allocation3 + %s273]]
      %s276 = ssub.s32 16, 16
      %277 = vsyncadd [#allocation7], %s276
      %s278 = smul.addr %s274, 16
      %s279 = scalar_lea.hbm %s7, %s278
      %s281 = sshll.u32 [#allocation6], 4
      %s282 = int_to_ptr.vmem [resolvable:$true] %s281
      %284 = dma.vmem_to_hbm [thread:$0]  %s282, 16, %s279, [#allocation7]
    $region37: #{tpu_custom_call.1} parent=1 // pred_fallthru
      _
    // Predicated region
    $region38: #{tpu_custom_call.1} parent=1 // pred_check
      _
    $region39: #{tpu_custom_call.1} parent=1 // pred_check_branch
      %286 = sbr.rel (0) target = $region41
    $region40: #{tpu_custom_call.1} parent=1 // pred_region
      %287 = dma.done [#allocation7], 16
    $region41: #{tpu_custom_call.1} parent=1 // pred_fallthru
      _
    %288 = vsyncpa [#allocation7], 1

</llo_original>
